<compile_context>
chip_gen: v7x
topology: tpu7x:2x2x1
jax: 0.10.0
libtpu: 0.0.40
codegen_flags: <defaults>
</compile_context>

<pallas_src>
import jax
import jax.numpy as jnp
from jax.experimental import pallas as pl
from jax.experimental.pallas import tpu as pltpu


def _add_pos_kernel(x_ref, pos_ref, o_ref):
    # x_ref/o_ref : (c_tile, l_tile)  one (channel-chunk, lane-chunk) tile of a batch
    # pos_ref     : (c_tile, l_tile) tile of the batch-invariant positional table,
    #               or the whole (C, L) table when it is VMEM-resident.
    o_ref[...] = x_ref[...] + pos_ref[...]


def _choose_tiles(c, L, itemsize, target_block_bytes):
    """Pick (c_tile, l_tile): lane-dense, dtype-aware sublane base, budget-bound."""
    sub_base = {4: 8, 2: 16, 1: 32}.get(itemsize, 8)

    # --- lane tile: prefer the full, contiguous L when a minimal block fits ---
    if L <= 128 or sub_base * L * itemsize <= target_block_bytes:
        l_tile = L
    else:
        max_lanes = (target_block_bytes // (sub_base * itemsize)) // 128 * 128
        l_tile = min(max(128, max_lanes), (L // 128) * 128)

    # --- channel tile: fill the remaining budget, multiple of sub_base ---
    cap_c = target_block_bytes // max(1, l_tile * itemsize)
    cap_c = max(sub_base, (cap_c // sub_base) * sub_base)
    c_tile = min(c, cap_c)
    if c_tile < c:
        c_tile = max(sub_base, (c_tile // sub_base) * sub_base)
    return c_tile, l_tile


def absolute_positional_embedding(x, emb_t, emb_h, emb_w, dim):
    """x: (B, C, T, H, W); emb_*: (max_*, dim) embedding tables."""
    b, c, t, h, w = x.shape
    assert c == dim
    scale = float(dim) ** -0.5
    L = t * h * w
    itemsize = jnp.dtype(x.dtype).itemsize

    # ---- plain-JAX glue: fold scale into tables, build batch-invariant pos --
    et = (emb_t[:t].astype(jnp.float32) * scale).T  # (C, T)
    eh = (emb_h[:h].astype(jnp.float32) * scale).T  # (C, H)
    ew = (emb_w[:w].astype(jnp.float32) * scale).T  # (C, W)
    pos = (et[:, :, None, None]
           + eh[:, None, :, None]
           + ew[:, None, None, :])                  # (C, T, H, W), f32
    pos = pos.reshape(c, L).astype(x.dtype)         # lane-dense, x dtype

    x_flat = x.reshape(b, c, L)

    # ---- generation-safe tiling (~2 MiB blocks; 4x double-buffered + pos
    #      stays under the 16/32/32 MiB scoped VMEM of v5e/v6e/v7x) ----------
    target_block_bytes = 2 << 20
    c_tile, l_tile = _choose_tiles(c, L, itemsize, target_block_bytes)
    nc = pl.cdiv(c, c_tile)
    nl = pl.cdiv(L, l_tile)

    # Keep pos fully VMEM-resident when small: one DMA for the whole call.
    pos_bytes = c * L * itemsize
    pos_resident = pos_bytes <= (4 << 20)

    # Grid: largest parallel axis outermost (feeds both v7x cores), batch
    # innermost so the pos block index is unchanged across consecutive steps
    # (Pallas skips the re-DMA even in the tiled fallback).
    if nl >= nc:
        grid = (nl, nc, b)
        x_map = lambda li, ci, bi: (bi, ci, li)
        pos_map_tiled = lambda li, ci, bi: (ci, li)
    else:
        grid = (nc, nl, b)
        x_map = lambda ci, li, bi: (bi, ci, li)
        pos_map_tiled = lambda ci, li, bi: (ci, li)

    if pos_resident:
        pos_spec = pl.BlockSpec((c, L), lambda *_: (0, 0))
    else:
        pos_spec = pl.BlockSpec((c_tile, l_tile), pos_map_tiled)

    cost = pl.CostEstimate(
        flops=b * c * L,                                   # one add per element
        transcendentals=0,
        bytes_accessed=2 * b * c * L * itemsize + pos_bytes,  # x read + out write + pos once
    )

    out = pl.pallas_call(
        _add_pos_kernel,
        out_shape=jax.ShapeDtypeStruct((b, c, L), x.dtype),
        grid_spec=pltpu.PrefetchScalarGridSpec(
            num_scalar_prefetch=0,
            grid=grid,
            in_specs=[
                pl.BlockSpec((pl.Squeezed(), c_tile, l_tile), x_map),
                pos_spec,
            ],
            out_specs=pl.BlockSpec((pl.Squeezed(), c_tile, l_tile), x_map),
        ),
        compiler_params=pltpu.CompilerParams(
            dimension_semantics=("parallel", "parallel", "parallel")),
        cost_estimate=cost,
    )(x_flat, pos)

    return out.reshape(b, c, t, h, w)


if __name__ == "__main__":
    # Small shapes consistent with the module.
    dim = 32
    max_seq_len = (8, 16, 16)          # (max_t, max_h, max_w)
    b, t, h, w = 2, 4, 8, 16

    key = jax.random.PRNGKey(0)
    kx, kt, kh, kw = jax.random.split(key, 4)

    x = jax.random.normal(kx, (b, dim, t, h, w), dtype=jnp.float32)
    # Deterministic "nn.Embedding" weights (normal init, like PyTorch default).
    emb_t = jax.random.normal(kt, (max_seq_len[0], dim), dtype=jnp.float32)
    emb_h = jax.random.normal(kh, (max_seq_len[1], dim), dtype=jnp.float32)
    emb_w = jax.random.normal(kw, (max_seq_len[2], dim), dtype=jnp.float32)

    out = absolute_positional_embedding(x, emb_t, emb_h, emb_w, dim)
    out = jax.block_until_ready(out)

    # Pure-JAX reference check (silent).
    scale = dim ** -0.5
    ref = (x
           + (emb_t[:t].T * scale)[None, :, :, None, None]
           + (emb_h[:h].T * scale)[None, :, None, :, None]
           + (emb_w[:w].T * scale)[None, :, None, None, :])
    assert jnp.allclose(out, ref, atol=1e-5, rtol=1e-5)

    print("KERNEL_OK")
</pallas_src>

<mosaic_0001>
module attributes {stable_mosaic.version = 11 : i64} {
  func.func @_add_pos_kernel(%arg0: i32, %arg1: i32, %arg2: i32, %arg3: memref<1x32x512xf32, #tpu.memory_space<vmem>>, %arg4: memref<32x512xf32, #tpu.memory_space<vmem>>, %arg5: memref<1x32x512xf32, #tpu.memory_space<vmem>>) attributes {dimension_semantics = [#tpu.dimension_semantics<parallel>, #tpu.dimension_semantics<parallel>, #tpu.dimension_semantics<parallel>], iteration_bounds = array<i64: 1, 1, 2>, scalar_prefetch = 0 : i64, scratch_operands = 0 : i64, tpu.core_type = #tpu.core_type<tc>, window_params = [{transform_indices = @transform_0, window_bounds = array<i64: 1, 32, 512>}, {pipeline_mode = #tpu.pipeline_mode<synchronous>, transform_indices = @transform_1, window_bounds = array<i64: 32, 512>}, {transform_indices = @transform_2, window_bounds = array<i64: 1, 32, 512>}]} {
    %c0 = arith.constant 0 : index
    %c0_0 = arith.constant 0 : index
    %c0_1 = arith.constant 0 : index
    %0 = vector.load %arg3[%c0, %c0_0, %c0_1] : memref<1x32x512xf32, #tpu.memory_space<vmem>>, vector<1x32x512xf32>
    %1 = vector.shape_cast %0 : vector<1x32x512xf32> to vector<32x512xf32>
    %c0_2 = arith.constant 0 : index
    %c0_3 = arith.constant 0 : index
    %2 = vector.load %arg4[%c0_2, %c0_3] : memref<32x512xf32, #tpu.memory_space<vmem>>, vector<32x512xf32>
    %3 = arith.addf %1, %2 : vector<32x512xf32>
    %c0_4 = arith.constant 0 : index
    %c0_5 = arith.constant 0 : index
    %c0_6 = arith.constant 0 : index
    %4 = vector.load %arg5[%c0_4, %c0_5, %c0_6] : memref<1x32x512xf32, #tpu.memory_space<vmem>>, vector<1x32x512xf32>
    %5 = vector.shape_cast %4 : vector<1x32x512xf32> to vector<32x512xf32>
    %6 = vector.shape_cast %3 : vector<32x512xf32> to vector<1x32x512xf32>
    tpu.vector_store %arg5[%c0_4, %c0_5, %c0_6], %6 {strides = array<i32>} : memref<1x32x512xf32, #tpu.memory_space<vmem>>, vector<1x32x512xf32>,
    return
  }
  func.func @transform_0(%arg0: i32, %arg1: i32, %arg2: i32) -> (i32, i32, i32) {
    %c0_i32 = arith.constant 0 : i32
    return %arg2, %arg1, %arg0 : i32, i32, i32
  }
  func.func @transform_1(%arg0: i32, %arg1: i32, %arg2: i32) -> (i32, i32) {
    %c0_i32 = arith.constant 0 : i32
    %c0_i32_0 = arith.constant 0 : i32
    %c0_i32_1 = arith.constant 0 : i32
    return %c0_i32, %c0_i32_0 : i32, i32
  }
  func.func @transform_2(%arg0: i32, %arg1: i32, %arg2: i32) -> (i32, i32, i32) {
    %c0_i32 = arith.constant 0 : i32
    return %arg2, %arg1, %arg0 : i32, i32, i32
  }
}

</mosaic_0001>

<llo_original>
// kernel: tpu_custom_call.1
$region0: #{tpu_custom_call.1}
  #allocation0 [shape = 'u32[]', space=smem, size = 0x4, offset = 0x4, fixed_abs, tag = 'smem constant byte address 0x4 - core index']
  #allocation1 [shape = 'u32[144,128]{1,0:T(1,128)}', space=vmem, size = 0x12000, scoped, tag = 'internal scratch']
  %s0 = inlined_call_operand.hbm [shape: f32[2,32,512], index: 0, kind: input, shape index: {}]
  %s1 = inlined_call_operand.hbm [shape: f32[32,512], index: 1, kind: input, shape index: {}]
  %s2 = inlined_call_operand.hbm [shape: f32[2,32,512], index: 2, kind: output, shape index: {}]
  %s3 = sld [smem:[#allocation0]]
  $region49: #{tpu_custom_call.1} parent=0
    _
  %s5 = ssub.s32 1, %s3
  %s6 = scalar_select 0, %s5, %s3
  $region1: #{tpu_custom_call.1} parent=0
    #allocation2 [shape = 'u8[131072]{0}', space=vmem, size = 0x20000, scoped, tag = 'input window, operand 0']
    #allocation3 [shape = 's32[2]{0}', space=sflag, size = 0x8, scoped, tag = 'scoped memory for tpu_custom_call.1']
    #allocation4 [shape = 's32[2]{0}', space=sflag, size = 0x8, scoped, tag = 'scoped memory for tpu_custom_call.1']
    #allocation5 [shape = 'u8[65536]{0}', space=vmem, size = 0x10000, scoped, tag = 'input window, operand 1, single buffered']
    #allocation6 [shape = 's32[1]{0}', space=sflag, size = 0x4, scoped, tag = 'scoped memory for tpu_custom_call.1']
    #allocation7 [shape = 'u8[131072]{0}', space=vmem, size = 0x20000, scoped, tag = 'output window, operand 0']
    %7 = vsyncpa [#allocation3], 0
    %s8 = scalar_lea.sflag [#allocation3], 1
    %9 = vsyncpa %s8, 0
    %10 = vsyncpa [#allocation6], 0
    %11 = vsyncpa [#allocation4], 0
    %s12 = scalar_lea.sflag [#allocation4], 1
    %13 = vsyncpa %s12, 0
    loop: start=0, step=1, limit=4
    $region2: #{tpu_custom_call.1} parent=1 // loop_pre_header
      _
    $region3: #{tpu_custom_call.1} parent=1 // loop_header
      %s15 = sphi 0, %s19
      %p16 = scmp.ge.s32.totalorder %s15, 4
      %s22 = sphi 0, %s41
      %s23 = sphi 0, %s37
      %s24 = sphi 0, %s33
      %s25 = sphi 0, %s22
      %s26 = sphi 0, %s23
      %s27 = sphi 0, %s24
      %s28 = sphi 0, %s25
      %s29 = sphi 0, %s26
      %s30 = sphi 0, %s27
      %s48 = sphi 0, %s50
      %s51 = sphi 0, %s48
      %s52 = sphi 0, %s51
      %s68 = sphi 0, %s52
      %s72 = sphi 0, %s72
      %s74 = sphi 0, %s72
      %s75 = sphi 0, %s74
      %s89 = sphi 0, %s75
      %s99 = sphi 0, %s101
      %s102 = sphi 0, %s99
      %s103 = sphi 0, %s102
      %s119 = sphi 0, %s103
    $region4: #{tpu_custom_call.1} parent=1 // loop_header_branch
      %18 = sbr.rel (%p16) target = $region8
    $region5: #{tpu_custom_call.1} parent=1 // loop_body
      %s20 = ssub.s32 %s15, 1
      %s21 = ssub.s32 %s15, 2
      %s31 = sadd.s32 1, %s24
      %p32 = scmp.ge.s32.totalorder %s31, 2
      %s33 = scalar_select %p32, 0, %s31
      %s34 = sadd.s32 1, %s23
      %s35 = scalar_select %p32, %s34, %s23
      %p36 = scmp.ge.s32.totalorder %s35, 1
      %s37 = scalar_select %p36, 0, %s35
      %s38 = sadd.s32 1, %s22
      %s39 = scalar_select %p36, %s38, %s22
      %p40 = scmp.ge.s32.totalorder %s39, 1
      %s41 = scalar_select %p40, 0, %s39
      %s42 = ssub.s32 %s24, %s33
      %s43 = ssub.s32 %s23, %s37
      %s44 = sor.u32 %s42, %s43
      %s45 = ssub.s32 %s22, %s41
      %s46 = sor.u32 %s44, %s45
      %p47 = scmp.eq.s32.totalorder %s46, 0
      %s49 = sadd.s32 %s48, 1
      %s50 = scalar_select %p47, %s48, %s49
      %p53 = pneg %p47
      %p54 = scmp.eq.s32.totalorder %s15, 1
      %p55 = por %p53, %p54
      %p56 = scmp.ne.s32.totalorder %s48, %s51
      %p57 = scmp.eq.s32.totalorder %s15, 0
      %p58 = por %p56, %p57
      %p59 = scmp.ne.s32.totalorder %s48, %s51
      %p60 = scmp.eq.s32.totalorder %s20, 1
      %p61 = por %p59, %p60
      %p62 = scmp.ne.s32.totalorder %s51, %s52
      %p63 = scmp.eq.s32.totalorder %s20, 0
      %p64 = por %p62, %p63
      %p65 = scmp.ne.s32.totalorder %s51, %s52
      %p66 = scmp.eq.s32.totalorder %s21, 1
      %p67 = por %p65, %p66
      %p69 = scmp.ne.s32.totalorder %s52, %s68
      %p70 = scmp.eq.s32.totalorder %s21, 0
      %p71 = por %p69, %p70
      %s73 = sadd.s32 %s72, 1
      %p76 = scmp.eq.s32.totalorder %s15, 1
      %p77 = scmp.ne.s32.totalorder %s72, %s74
      %p78 = scmp.eq.s32.totalorder %s15, 0
      %p79 = por %p77, %p78
      %p80 = scmp.ne.s32.totalorder %s72, %s74
      %p81 = scmp.eq.s32.totalorder %s20, 1
      %p82 = por %p80, %p81
      %p83 = scmp.ne.s32.totalorder %s74, %s75
      %p84 = scmp.eq.s32.totalorder %s20, 0
      %p85 = por %p83, %p84
      %p86 = scmp.ne.s32.totalorder %s74, %s75
      %p87 = scmp.eq.s32.totalorder %s21, 1
      %p88 = por %p86, %p87
      %p90 = scmp.ne.s32.totalorder %s75, %s89
      %p91 = scmp.eq.s32.totalorder %s21, 0
      %p92 = por %p90, %p91
      %s93 = ssub.s32 %s24, %s33
      %s94 = ssub.s32 %s23, %s37
      %s95 = sor.u32 %s93, %s94
      %s96 = ssub.s32 %s22, %s41
      %s97 = sor.u32 %s95, %s96
      %p98 = scmp.eq.s32.totalorder %s97, 0
      %s100 = sadd.s32 %s99, 1
      %s101 = scalar_select %p98, %s99, %s100
      %p104 = pneg %p98
      %p105 = scmp.eq.s32.totalorder %s15, 1
      %p106 = por %p104, %p105
      %p107 = scmp.ne.s32.totalorder %s99, %s102
      %p108 = scmp.eq.s32.totalorder %s15, 0
      %p109 = por %p107, %p108
      %p110 = scmp.ne.s32.totalorder %s99, %s102
      %p111 = scmp.eq.s32.totalorder %s20, 1
      %p112 = por %p110, %p111
      %p113 = scmp.ne.s32.totalorder %s102, %s103
      %p114 = scmp.eq.s32.totalorder %s20, 0
      %p115 = por %p113, %p114
      %p116 = scmp.ne.s32.totalorder %s102, %s103
      %p117 = scmp.eq.s32.totalorder %s21, 1
      %p118 = por %p116, %p117
      %p120 = scmp.ne.s32.totalorder %s103, %s119
      %p121 = scmp.eq.s32.totalorder %s21, 0
      %p122 = por %p120, %p121
      %p123 = scmp.le.s32.totalorder 1, %s15
      %p124 = scmp.lt.s32.totalorder %s15, 3
      %p125 = pnand %p123, %p124
      %p126 = pneg %p125
      // Predicated region
      $region9: #{tpu_custom_call.1} parent=5 // pred_check
        _
      $region10: #{tpu_custom_call.1} parent=5 // pred_check_branch
        %128 = sbr.rel (%p125) target = $region12
      $region11: #{tpu_custom_call.1} parent=5 // pred_region
        %s129 = ssub.s32 %s15, 1
        // Predicated region
        $region13: #{tpu_custom_call.1} parent=11 // pred_check
          %p130 = pneg %p85
        $region14: #{tpu_custom_call.1} parent=11 // pred_check_branch
          %132 = sbr.rel (%p130) target = $region16
        $region15: #{tpu_custom_call.1} parent=11 // pred_region
          %s134 = ssub.s32 2048, 2048
          %135 = vsyncadd [#allocation6], %s134
          %s136 = sshll.u32 [#allocation5], 4
          %s137 = int_to_ptr.vmem [resolvable:$true] %s136
          %142 = dma.hbm_to_vmem [thread:$0]  %s1, 2048, %s137, [#allocation6], 512, 512, 32
        $region16: #{tpu_custom_call.1} parent=11 // pred_fallthru
          _
      $region12: #{tpu_custom_call.1} parent=5 // pred_fallthru
        _
      %p143 = scmp.lt.s32.totalorder %s15, 2
      // Predicated region
      $region17: #{tpu_custom_call.1} parent=5 // pred_check
        %p144 = pneg %p143
      $region18: #{tpu_custom_call.1} parent=5 // pred_check_branch
        %146 = sbr.rel (%p144) target = $region20
      $region19: #{tpu_custom_call.1} parent=5 // pred_region
        // Predicated region
        $region21: #{tpu_custom_call.1} parent=19 // pred_check
          %p147 = pneg %p58
        $region22: #{tpu_custom_call.1} parent=19 // pred_check_branch
          %149 = sbr.rel (%p147) target = $region24
        $region23: #{tpu_custom_call.1} parent=19 // pred_region
          %s150 = sand.u32 %s48, 1
          %s151 = scalar_lea.sflag [#allocation3], %s150
          %s152 = sand.u32 %s48, 1
          %s153 = smul.addr %s152, 128
          %s154 = scalar_lea.vmem [#allocation2], %s153
          %s155 = smul.u32 4, %s23
          %s156 = smul.u32 4, %s22
          %s158 = ssub.s32 2048, 2048
          %159 = vsyncadd %s151, %s158
          %s160 = smul.addr %s155, 4
          %s161 = sadd.s32 %s156, %s160
          %s162 = smul.addr %s24, 16
          %s163 = sadd.s32 %s161, %s162
          %s164 = smul.addr %s163, 128
          %s165 = scalar_lea.hbm %s0, %s164
          %s166 = sshll.u32 %s154, 4
          %s167 = int_to_ptr.vmem [resolvable:$true] %s166
          %172 = dma.hbm_to_vmem [thread:$0]  %s165, 2048, %s167, %s151, 512, 512, 32
        $region24: #{tpu_custom_call.1} parent=19 // pred_fallthru
          _
      $region20: #{tpu_custom_call.1} parent=5 // pred_fallthru
        _
      %p173 = scmp.le.s32.totalorder 1, %s15
      %p174 = scmp.lt.s32.totalorder %s15, 3
      %p175 = pnand %p173, %p174
      %p176 = pneg %p175
      // Predicated region
      $region25: #{tpu_custom_call.1} parent=5 // pred_check
        _
      $region26: #{tpu_custom_call.1} parent=5 // pred_check_branch
        %178 = sbr.rel (%p175) target = $region28
      $region27: #{tpu_custom_call.1} parent=5 // pred_region
        %s179 = ssub.s32 %s15, 1
        %s180 = sand.u32 %s51, 1
        %s181 = scalar_lea.sflag [#allocation3], %s180
        %s182 = sand.u32 %s51, 1
        %s183 = smul.addr %s182, 128
        %s184 = scalar_lea.vmem [#allocation2], %s183
        // Predicated region
        $region29: #{tpu_custom_call.1} parent=27 // pred_check
          %p185 = pneg %p64
        $region30: #{tpu_custom_call.1} parent=27 // pred_check_branch
          %187 = sbr.rel (%p185) target = $region32
        $region31: #{tpu_custom_call.1} parent=27 // pred_region
          %188 = dma.done %s181, 2048
        $region32: #{tpu_custom_call.1} parent=27 // pred_fallthru
          _
        // Predicated region
        $region33: #{tpu_custom_call.1} parent=27 // pred_check
          %p189 = pneg %p85
        $region34: #{tpu_custom_call.1} parent=27 // pred_check_branch
          %191 = sbr.rel (%p189) target = $region36
        $region35: #{tpu_custom_call.1} parent=27 // pred_region
          %192 = dma.done [#allocation6], 2048
        $region36: #{tpu_custom_call.1} parent=27 // pred_fallthru
          _
        %s193 = sand.u32 %s51, 1
        %s194 = scalar_lea.sflag [#allocation3], %s193
        %s195 = sand.u32 %s51, 1
        %s196 = smul.addr %s195, 128
        %s197 = scalar_lea.vmem [#allocation2], %s196
        %p198 = pneg %p64
        %p199 = pneg %p61
        %p200 = pneg %p85
        %p201 = pneg %p82
        %p202 = pneg %p115
        %p203 = pneg %p112
        %s204 = sand.u32 %s102, 1
        %s205 = scalar_lea.sflag [#allocation4], %s204
        %s206 = sand.u32 %s102, 1
        %s207 = smul.addr %s206, 128
        %s208 = scalar_lea.vmem [#allocation7], %s207
        %s209 = smul.u32 4, %s26
        %s210 = smul.u32 4, %s25
        %s211 = smul.u32 4, %s26
        %s212 = smul.u32 4, %s25
        %v213 = vld [vmem:[%s184] sm:$0xff]
        %v214 = vld [vmem:[%s184 + $0x8] sm:$0xff]
        %v215 = vld [vmem:[%s184 + $0x10] sm:$0xff]
        %v216 = vld [vmem:[%s184 + $0x18] sm:$0xff]
        %v217 = vld [vmem:[%s184 + $0x20] sm:$0xff]
        %v218 = vld [vmem:[%s184 + $0x28] sm:$0xff]
        %v219 = vld [vmem:[%s184 + $0x30] sm:$0xff]
        %v220 = vld [vmem:[%s184 + $0x38] sm:$0xff]
        %v221 = vld [vmem:[%s184 + $0x40] sm:$0xff]
        %v222 = vld [vmem:[%s184 + $0x48] sm:$0xff]
        %v223 = vld [vmem:[%s184 + $0x50] sm:$0xff]
        %v224 = vld [vmem:[%s184 + $0x58] sm:$0xff]
        %v225 = vld [vmem:[%s184 + $0x60] sm:$0xff]
        %v226 = vld [vmem:[%s184 + $0x68] sm:$0xff]
        %v227 = vld [vmem:[%s184 + $0x70] sm:$0xff]
        %v228 = vld [vmem:[%s184 + $0x78] sm:$0xff]
        %v229 = vld [vmem:[#allocation5] sm:$0xff]
        %v230 = vld [vmem:[#allocation5 + $0x8] sm:$0xff]
        %v231 = vld [vmem:[#allocation5 + $0x10] sm:$0xff]
        %v232 = vld [vmem:[#allocation5 + $0x18] sm:$0xff]
        %v233 = vld [vmem:[#allocation5 + $0x20] sm:$0xff]
        %v234 = vld [vmem:[#allocation5 + $0x28] sm:$0xff]
        %v235 = vld [vmem:[#allocation5 + $0x30] sm:$0xff]
        %v236 = vld [vmem:[#allocation5 + $0x38] sm:$0xff]
        %v237 = vld [vmem:[#allocation5 + $0x40] sm:$0xff]
        %v238 = vld [vmem:[#allocation5 + $0x48] sm:$0xff]
        %v239 = vld [vmem:[#allocation5 + $0x50] sm:$0xff]
        %v240 = vld [vmem:[#allocation5 + $0x58] sm:$0xff]
        %v241 = vld [vmem:[#allocation5 + $0x60] sm:$0xff]
        %v242 = vld [vmem:[#allocation5 + $0x68] sm:$0xff]
        %v243 = vld [vmem:[#allocation5 + $0x70] sm:$0xff]
        %v244 = vld [vmem:[#allocation5 + $0x78] sm:$0xff]
        %v245 = vadd.f32 %v213, %v229
        %v246 = vadd.f32 %v214, %v230
        %v247 = vadd.f32 %v215, %v231
        %v248 = vadd.f32 %v216, %v232
        %v249 = vadd.f32 %v217, %v233
        %v250 = vadd.f32 %v218, %v234
        %v251 = vadd.f32 %v219, %v235
        %v252 = vadd.f32 %v220, %v236
        %v253 = vadd.f32 %v221, %v237
        %v254 = vadd.f32 %v222, %v238
        %v255 = vadd.f32 %v223, %v239
        %v256 = vadd.f32 %v224, %v240
        %v257 = vadd.f32 %v225, %v241
        %v258 = vadd.f32 %v226, %v242
        %v259 = vadd.f32 %v227, %v243
        %v260 = vadd.f32 %v228, %v244
        %261 = vst [vmem:[%s208] sm:$0xff] %v245
        %262 = vst [vmem:[%s208 + $0x8] sm:$0xff] %v246
        %263 = vst [vmem:[%s208 + $0x10] sm:$0xff] %v247
        %264 = vst [vmem:[%s208 + $0x18] sm:$0xff] %v248
        %265 = vst [vmem:[%s208 + $0x20] sm:$0xff] %v249
        %266 = vst [vmem:[%s208 + $0x28] sm:$0xff] %v250
        %267 = vst [vmem:[%s208 + $0x30] sm:$0xff] %v251
        %268 = vst [vmem:[%s208 + $0x38] sm:$0xff] %v252
        %269 = vst [vmem:[%s208 + $0x40] sm:$0xff] %v253
        %270 = vst [vmem:[%s208 + $0x48] sm:$0xff] %v254
        %271 = vst [vmem:[%s208 + $0x50] sm:$0xff] %v255
        %272 = vst [vmem:[%s208 + $0x58] sm:$0xff] %v256
        %273 = vst [vmem:[%s208 + $0x60] sm:$0xff] %v257
        %274 = vst [vmem:[%s208 + $0x68] sm:$0xff] %v258
        %275 = vst [vmem:[%s208 + $0x70] sm:$0xff] %v259
        %276 = vst [vmem:[%s208 + $0x78] sm:$0xff] %v260
        %s277 = sand.u32 %s102, 1
        %s278 = scalar_lea.sflag [#allocation4], %s277
        %s279 = sand.u32 %s102, 1
        %s280 = smul.addr %s279, 128
        %s281 = scalar_lea.vmem [#allocation7], %s280
        // Predicated region
        $region37: #{tpu_custom_call.1} parent=27 // pred_check
          %p282 = pneg %p112
        $region38: #{tpu_custom_call.1} parent=27 // pred_check_branch
          %284 = sbr.rel (%p282) target = $region40
        $region39: #{tpu_custom_call.1} parent=27 // pred_region
          %s285 = smul.u32 4, %s26
          %s286 = smul.u32 4, %s25
          %s288 = ssub.s32 2048, 2048
          %289 = vsyncadd %s278, %s288
          %s290 = smul.addr %s285, 4
          %s291 = sadd.s32 %s286, %s290
          %s292 = smul.addr %s27, 16
          %s293 = sadd.s32 %s291, %s292
          %s294 = smul.addr %s293, 128
          %s295 = scalar_lea.hbm %s2, %s294
          %s296 = sshll.u32 %s281, 4
          %s297 = int_to_ptr.vmem [resolvable:$true] %s296
          %302 = dma.vmem_to_hbm [thread:$0]  %s297, 2048, %s295, %s278, 512, 512, 32
        $region40: #{tpu_custom_call.1} parent=27 // pred_fallthru
          _
      $region28: #{tpu_custom_call.1} parent=5 // pred_fallthru
        _
      %p303 = scmp.le.s32.totalorder 2, %s15
      // Predicated region
      $region41: #{tpu_custom_call.1} parent=5 // pred_check
        %p304 = pneg %p303
      $region42: #{tpu_custom_call.1} parent=5 // pred_check_branch
        %306 = sbr.rel (%p304) target = $region44
      $region43: #{tpu_custom_call.1} parent=5 // pred_region
        %s307 = ssub.s32 %s15, 2
        // Predicated region
        $region45: #{tpu_custom_call.1} parent=43 // pred_check
          %p308 = pneg %p118
        $region46: #{tpu_custom_call.1} parent=43 // pred_check_branch
          %310 = sbr.rel (%p308) target = $region48
        $region47: #{tpu_custom_call.1} parent=43 // pred_region
          %s311 = sand.u32 %s103, 1
          %s312 = scalar_lea.sflag [#allocation4], %s311
          %s313 = sand.u32 %s103, 1
          %s314 = smul.addr %s313, 128
          %s315 = scalar_lea.vmem [#allocation7], %s314
          %316 = dma.done %s312, 2048
        $region48: #{tpu_custom_call.1} parent=43 // pred_fallthru
          _
      $region44: #{tpu_custom_call.1} parent=5 // pred_fallthru
        _
    $region6: #{tpu_custom_call.1} parent=1 // loop_footer
      %s19 = sadd.s32 1, %s15
    $region7: #{tpu_custom_call.1} parent=1 // loop_footer_branch
      %14 = sbr.rel target = $region3
    $region8: #{tpu_custom_call.1} parent=1 // loop_exit
      _
    %317 = vsyncpa [#allocation3], 1
    %s318 = scalar_lea.sflag [#allocation3], 1
    %319 = vsyncpa %s318, 1
    %320 = vsyncpa [#allocation6], 1
    %321 = vsyncpa [#allocation4], 1
    %s322 = scalar_lea.sflag [#allocation4], 1
    %323 = vsyncpa %s322, 1

</llo_original>
